<compile_context>
chip_gen: v5e
topology: v5e:2x2
jax: 0.10.0
libtpu: 0.0.40
codegen_flags: <defaults>
</compile_context>

<pallas_src>
import jax
import jax.numpy as jnp
from jax.experimental import pallas as pl
from jax.experimental.pallas import tpu as pltpu

IN_DIM = 28 * 28        # 784 flattened MNIST pixels
HIDDEN = 128
LATENT = 32


def autoencoder_kernel(x_ref,
                       w1_ref, b1_ref,     # encoder layer 1: 784 -> 128
                       w23_ref, b23_ref,   # fused enc2+dec1: 128 -> 128
                       w4_ref, b4_ref,     # decoder layer 2: 128 -> 784
                       out_ref):
    # encoder layer 1 + ReLU (x is already bf16 in HBM; f32 accumulation)
    h1 = jnp.dot(x_ref[...], w1_ref[...],
                 preferred_element_type=jnp.float32) + b1_ref[...]
    h1 = jnp.maximum(h1, 0.0)

    # fused (encoder layer 2 -> decoder layer 1): no nonlinearity in between,
    # so z @ W3 + b3 == h1 @ (W2 @ W3) + (b2 @ W3 + b3); then the decoder ReLU.
    h2 = jnp.dot(h1.astype(jnp.bfloat16), w23_ref[...],
                 preferred_element_type=jnp.float32) + b23_ref[...]
    h2 = jnp.maximum(h2, 0.0)

    # decoder layer 2 (reconstruction)
    out = jnp.dot(h2.astype(jnp.bfloat16), w4_ref[...],
                  preferred_element_type=jnp.float32) + b4_ref[...]
    out_ref[...] = out.astype(out_ref.dtype)


def autoencoder_forward(x, kparams, *, tile_b=128, out_dtype=jnp.float32):
    """x: [B, ...] -> reconstruction [B, IN_DIM] (flattens like the module)."""
    B = x.shape[0]
    # Flatten like the module; activation I/O is bf16 at the HBM level.
    # TODO(synk): in a real pipeline fuse this cast into the upstream producer
    # so the kernel's input is already bf16 (a standalone cast is its own pass).
    xf = x.reshape(B, -1).astype(jnp.bfloat16)
    assert xf.shape[1] == IN_DIM

    grid_b = pl.cdiv(B, tile_b)
    b_pad = grid_b * tile_b
    if b_pad != B:
        # pad only the batch dim to a tile multiple (no feature padding)
        xf = jnp.pad(xf, ((0, b_pad - B), (0, 0)))

    flops = 2 * b_pad * (IN_DIM * HIDDEN + HIDDEN * HIDDEN + HIDDEN * IN_DIM)
    bytes_accessed = (
        b_pad * IN_DIM * (xf.dtype.itemsize + jnp.dtype(out_dtype).itemsize)
        + sum(int(p.size) * p.dtype.itemsize for p in kparams))

    # full-extent 784 last dim: legal since block last dim == array last dim
    row_spec = pl.BlockSpec((tile_b, IN_DIM), lambda b: (b, 0))

    def const_spec(shape):
        # constant index_map -> same block every grid step, stays VMEM resident
        return pl.BlockSpec(shape, lambda b: (0, 0))

    out = pl.pallas_call(
        autoencoder_kernel,
        out_shape=jax.ShapeDtypeStruct((b_pad, IN_DIM), out_dtype),
        grid=(grid_b,),
        in_specs=[
            row_spec,
            const_spec((IN_DIM, HIDDEN)), const_spec((1, HIDDEN)),
            const_spec((HIDDEN, HIDDEN)), const_spec((1, HIDDEN)),
            const_spec((HIDDEN, IN_DIM)), const_spec((1, IN_DIM)),
        ],
        out_specs=row_spec,
        compiler_params=pltpu.CompilerParams(
            # shard the batch grid across v7x's 2 TensorCores; default scoped
            # VMEM limit is plenty (working set << 16 MiB), so no override.
            dimension_semantics=("parallel",),
        ),
        cost_estimate=pl.CostEstimate(
            flops=flops, transcendentals=0, bytes_accessed=bytes_accessed),
    )(xf, *kparams)

    return out if b_pad == B else out[:B]


def init_params(key):
    """Torch-like f32 parameters ([in, out] layout, i.e. nn.Linear weight^T)."""
    def linear(key, fan_in, fan_out):
        kw, kb = jax.random.split(key)
        bound = 1.0 / jnp.sqrt(fan_in)
        w = jax.random.uniform(kw, (fan_in, fan_out), jnp.float32, -bound, bound)
        b = jax.random.uniform(kb, (1, fan_out), jnp.float32, -bound, bound)
        return w, b

    k1, k2, k3, k4 = jax.random.split(key, 4)
    w1, b1 = linear(k1, IN_DIM, HIDDEN)
    w2, b2 = linear(k2, HIDDEN, LATENT)
    w3, b3 = linear(k3, LATENT, HIDDEN)
    w4, b4 = linear(k4, HIDDEN, IN_DIM)
    return (w1, b1, w2, b2, w3, b3, w4, b4)


def prepare_kernel_params(params):
    """Fuse the un-activated middle layers; bf16 weights, f32 biases, no padding."""
    w1, b1, w2, b2, w3, b3, w4, b4 = params
    w23 = w2 @ w3                       # exact: no ReLU between enc2 and dec1
    b23 = b2 @ w3 + b3
    return (w1.astype(jnp.bfloat16), b1.astype(jnp.float32),
            w23.astype(jnp.bfloat16), b23.astype(jnp.float32),
            w4.astype(jnp.bfloat16), b4.astype(jnp.float32))


def reference_forward(x_flat, params):
    """Pure-JAX f32 reference mirroring the PyTorch forward semantics."""
    w1, b1, w2, b2, w3, b3, w4, b4 = params
    h1 = jnp.maximum(x_flat @ w1 + b1, 0.0)
    z = h1 @ w2 + b2
    h2 = jnp.maximum(z @ w3 + b3, 0.0)
    return h2 @ w4 + b4


# TODO(synk): optimizer / training_step / validation_step / getReconstructions
# are training-loop & data-loader machinery, not forward-pass compute, and are
# not translated.

if __name__ == "__main__":
    key = jax.random.PRNGKey(0)
    k_x, k_p = jax.random.split(key)

    # Small deterministic example: images [B, 1, 28, 28]; the module flattens
    # them to [B, 784] before the encoder.
    BATCH = 16
    x_img = jax.random.normal(k_x, (BATCH, 1, 28, 28), jnp.float32)

    params = init_params(k_p)
    kparams = prepare_kernel_params(params)

    recon = autoencoder_forward(x_img, kparams, tile_b=8)   # grid = (2,)
    recon = jax.block_until_ready(recon)

    ref = reference_forward(x_img.reshape(BATCH, -1), params)
    assert recon.shape == (BATCH, IN_DIM)
    max_err = float(jnp.max(jnp.abs(recon - ref)))
    # bf16 activations/weights (f32 accumulation) + exact layer fusion:
    # compare against the f32 reference with a loosened tolerance.
    assert jnp.allclose(recon, ref, atol=3e-2, rtol=3e-2), \
        f"mismatch vs reference, max|err|={max_err}"

    print("KERNEL_OK")
</pallas_src>

<mosaic_0001>
module attributes {stable_mosaic.version = 11 : i64} {
  func.func @autoencoder_kernel(%arg0: i32, %arg1: memref<8x784xbf16, #tpu.memory_space<vmem>>, %arg2: memref<784x128xbf16, #tpu.memory_space<vmem>>, %arg3: memref<1x128xf32, #tpu.memory_space<vmem>>, %arg4: memref<128x128xbf16, #tpu.memory_space<vmem>>, %arg5: memref<1x128xf32, #tpu.memory_space<vmem>>, %arg6: memref<128x784xbf16, #tpu.memory_space<vmem>>, %arg7: memref<1x784xf32, #tpu.memory_space<vmem>>, %arg8: memref<8x784xf32, #tpu.memory_space<vmem>>) attributes {dimension_semantics = [#tpu.dimension_semantics<parallel>], iteration_bounds = array<i64: 2>, scalar_prefetch = 0 : i64, scratch_operands = 0 : i64, tpu.core_type = #tpu.core_type<tc>, window_params = [{transform_indices = @transform_0, window_bounds = array<i64: 8, 784>}, {pipeline_mode = #tpu.pipeline_mode<synchronous>, transform_indices = @transform_1, window_bounds = array<i64: 784, 128>}, {pipeline_mode = #tpu.pipeline_mode<synchronous>, transform_indices = @transform_2, window_bounds = array<i64: 1, 128>}, {pipeline_mode = #tpu.pipeline_mode<synchronous>, transform_indices = @transform_3, window_bounds = array<i64: 128, 128>}, {pipeline_mode = #tpu.pipeline_mode<synchronous>, transform_indices = @transform_4, window_bounds = array<i64: 1, 128>}, {pipeline_mode = #tpu.pipeline_mode<synchronous>, transform_indices = @transform_5, window_bounds = array<i64: 128, 784>}, {pipeline_mode = #tpu.pipeline_mode<synchronous>, transform_indices = @transform_6, window_bounds = array<i64: 1, 784>}, {transform_indices = @transform_7, window_bounds = array<i64: 8, 784>}]} {
    %c0 = arith.constant 0 : index
    %c0_0 = arith.constant 0 : index
    %0 = vector.load %arg1[%c0, %c0_0] : memref<8x784xbf16, #tpu.memory_space<vmem>>, vector<8x784xbf16>
    %c0_1 = arith.constant 0 : index
    %c0_2 = arith.constant 0 : index
    %1 = vector.load %arg2[%c0_1, %c0_2] : memref<784x128xbf16, #tpu.memory_space<vmem>>, vector<784x128xbf16>
    %cst = arith.constant dense<0.000000e+00> : vector<8x128xf32>
    %2 = tpu.matmul %0, %1, %cst {dimension_numbers = #tpu.dot_dimension_numbers<[1], [0], [0], [1], [0, 0, 1, 1], [], []>} : vector<8x784xbf16>, vector<784x128xbf16>, vector<8x128xf32> -> vector<8x128xf32>
    %c0_3 = arith.constant 0 : index
    %c0_4 = arith.constant 0 : index
    %3 = vector.load %arg3[%c0_3, %c0_4] : memref<1x128xf32, #tpu.memory_space<vmem>>, vector<1x128xf32>
    %4 = vector.broadcast %3 : vector<1x128xf32> to vector<8x128xf32>
    %5 = arith.addf %2, %4 : vector<8x128xf32>
    %cst_5 = arith.constant 0.000000e+00 : f32
    %6 = vector.broadcast %cst_5 : f32 to vector<8x128xf32>
    %7 = arith.maximumf %5, %6 : vector<8x128xf32>
    %8 = arith.truncf %7 : vector<8x128xf32> to vector<8x128xbf16>
    %c0_6 = arith.constant 0 : index
    %c0_7 = arith.constant 0 : index
    %9 = vector.load %arg4[%c0_6, %c0_7] : memref<128x128xbf16, #tpu.memory_space<vmem>>, vector<128x128xbf16>
    %cst_8 = arith.constant dense<0.000000e+00> : vector<8x128xf32>
    %10 = tpu.matmul %8, %9, %cst_8 {dimension_numbers = #tpu.dot_dimension_numbers<[1], [0], [0], [1], [0, 0, 1, 1], [], []>} : vector<8x128xbf16>, vector<128x128xbf16>, vector<8x128xf32> -> vector<8x128xf32>
    %c0_9 = arith.constant 0 : index
    %c0_10 = arith.constant 0 : index
    %11 = vector.load %arg5[%c0_9, %c0_10] : memref<1x128xf32, #tpu.memory_space<vmem>>, vector<1x128xf32>
    %12 = vector.broadcast %11 : vector<1x128xf32> to vector<8x128xf32>
    %13 = arith.addf %10, %12 : vector<8x128xf32>
    %cst_11 = arith.constant 0.000000e+00 : f32
    %14 = vector.broadcast %cst_11 : f32 to vector<8x128xf32>
    %15 = arith.maximumf %13, %14 : vector<8x128xf32>
    %16 = arith.truncf %15 : vector<8x128xf32> to vector<8x128xbf16>
    %c0_12 = arith.constant 0 : index
    %c0_13 = arith.constant 0 : index
    %17 = vector.load %arg6[%c0_12, %c0_13] : memref<128x784xbf16, #tpu.memory_space<vmem>>, vector<128x784xbf16>
    %cst_14 = arith.constant dense<0.000000e+00> : vector<8x784xf32>
    %18 = tpu.matmul %16, %17, %cst_14 {dimension_numbers = #tpu.dot_dimension_numbers<[1], [0], [0], [1], [0, 0, 1, 1], [], []>} : vector<8x128xbf16>, vector<128x784xbf16>, vector<8x784xf32> -> vector<8x784xf32>
    %c0_15 = arith.constant 0 : index
    %c0_16 = arith.constant 0 : index
    %19 = vector.load %arg7[%c0_15, %c0_16] : memref<1x784xf32, #tpu.memory_space<vmem>>, vector<1x784xf32>
    %20 = vector.broadcast %19 : vector<1x784xf32> to vector<8x784xf32>
    %21 = arith.addf %18, %20 : vector<8x784xf32>
    %c0_17 = arith.constant 0 : index
    %c0_18 = arith.constant 0 : index
    %22 = vector.load %arg8[%c0_17, %c0_18] : memref<8x784xf32, #tpu.memory_space<vmem>>, vector<8x784xf32>
    tpu.vector_store %arg8[%c0_17, %c0_18], %21 {strides = array<i32>} : memref<8x784xf32, #tpu.memory_space<vmem>>, vector<8x784xf32>,
    return
  }
  func.func @transform_0(%arg0: i32) -> (i32, i32) {
    %c0_i32 = arith.constant 0 : i32
    %c0_i32_0 = arith.constant 0 : i32
    return %arg0, %c0_i32 : i32, i32
  }
  func.func @transform_1(%arg0: i32) -> (i32, i32) {
    %c0_i32 = arith.constant 0 : i32
    %c0_i32_0 = arith.constant 0 : i32
    %c0_i32_1 = arith.constant 0 : i32
    return %c0_i32, %c0_i32_0 : i32, i32
  }
  func.func @transform_2(%arg0: i32) -> (i32, i32) {
    %c0_i32 = arith.constant 0 : i32
    %c0_i32_0 = arith.constant 0 : i32
    %c0_i32_1 = arith.constant 0 : i32
    return %c0_i32, %c0_i32_0 : i32, i32
  }
  func.func @transform_3(%arg0: i32) -> (i32, i32) {
    %c0_i32 = arith.constant 0 : i32
    %c0_i32_0 = arith.constant 0 : i32
    %c0_i32_1 = arith.constant 0 : i32
    return %c0_i32, %c0_i32_0 : i32, i32
  }
  func.func @transform_4(%arg0: i32) -> (i32, i32) {
    %c0_i32 = arith.constant 0 : i32
    %c0_i32_0 = arith.constant 0 : i32
    %c0_i32_1 = arith.constant 0 : i32
    return %c0_i32, %c0_i32_0 : i32, i32
  }
  func.func @transform_5(%arg0: i32) -> (i32, i32) {
    %c0_i32 = arith.constant 0 : i32
    %c0_i32_0 = arith.constant 0 : i32
    %c0_i32_1 = arith.constant 0 : i32
    return %c0_i32, %c0_i32_0 : i32, i32
  }
  func.func @transform_6(%arg0: i32) -> (i32, i32) {
    %c0_i32 = arith.constant 0 : i32
    %c0_i32_0 = arith.constant 0 : i32
    %c0_i32_1 = arith.constant 0 : i32
    return %c0_i32, %c0_i32_0 : i32, i32
  }
  func.func @transform_7(%arg0: i32) -> (i32, i32) {
    %c0_i32 = arith.constant 0 : i32
    %c0_i32_0 = arith.constant 0 : i32
    return %arg0, %c0_i32 : i32, i32
  }
}

</mosaic_0001>

<llo_original>
// kernel: tpu_custom_call.1
$region0: #{tpu_custom_call.1}
  #allocation0 [shape = 'u32[]', space=smem, size = 0x4, offset = 0x4, fixed_abs, tag = 'smem constant byte address 0x4 - core index']
  #allocation1 [shape = 'u32[72,128]{1,0:T(1,128)}', space=vmem, size = 0x9000, scoped, tag = 'internal scratch']
  %s0 = inlined_call_operand.vmem [shape: bf16[16,784], index: 0, kind: input, shape index: {}]
  %s1 = inlined_call_operand.vmem [shape: bf16[784,128], index: 1, kind: input, shape index: {}]
  %s2 = inlined_call_operand.vmem [shape: f32[1,128], index: 2, kind: input, shape index: {}]
  %s3 = inlined_call_operand.vmem [shape: bf16[128,128], index: 3, kind: input, shape index: {}]
  %s4 = inlined_call_operand.vmem [shape: f32[1,128], index: 4, kind: input, shape index: {}]
  %s5 = inlined_call_operand.vmem [shape: bf16[128,784], index: 5, kind: input, shape index: {}]
  %s6 = inlined_call_operand.vmem [shape: f32[1,784], index: 6, kind: input, shape index: {}]
  %s7 = inlined_call_operand.hbm [shape: f32[16,784], index: 7, kind: output, shape index: {}]
  %s8 = sld [smem:[#allocation0]]
  $region61: #{tpu_custom_call.1} parent=0
    _
  %s10 = ssub.s32 1, %s8
  %s11 = scalar_select 0, %s10, %s8
  $region1: #{tpu_custom_call.1} parent=0
    #allocation2 [shape = 'u8[57344]{0}', space=vmem, size = 0xe000, scoped, tag = 'output window, operand 0']
    #allocation3 [shape = 's32[2]{0}', space=sflag, size = 0x8, scoped, tag = 'scoped memory for tpu_custom_call.1']
    %12 = vsyncpa [#allocation3], 0
    %s13 = scalar_lea.sflag [#allocation3], 1
    %14 = vsyncpa %s13, 0
    loop: start=0, step=1, limit=4
    $region2: #{tpu_custom_call.1} parent=1 // loop_pre_header
      _
    $region3: #{tpu_custom_call.1} parent=1 // loop_header
      %s16 = sphi 0, %s20
      %p17 = scmp.ge.s32.totalorder %s16, 4
      %s26 = sphi 0, %s28
      %s29 = sphi 0, %s26
      %s30 = sphi 0, %s29
      %s46 = sphi 0, %s30
      %s50 = sphi 0, %s50
      %s52 = sphi 0, %s50
      %s53 = sphi 0, %s52
      %s67 = sphi 0, %s53
      %s71 = sphi 0, %s71
      %s73 = sphi 0, %s71
      %s74 = sphi 0, %s73
      %s88 = sphi 0, %s74
      %s92 = sphi 0, %s92
      %s94 = sphi 0, %s92
      %s95 = sphi 0, %s94
      %s109 = sphi 0, %s95
      %s113 = sphi 0, %s113
      %s115 = sphi 0, %s113
      %s116 = sphi 0, %s115
      %s130 = sphi 0, %s116
      %s134 = sphi 0, %s134
      %s136 = sphi 0, %s134
      %s137 = sphi 0, %s136
      %s151 = sphi 0, %s137
      %s155 = sphi 0, %s155
      %s157 = sphi 0, %s155
      %s158 = sphi 0, %s157
      %s172 = sphi 0, %s158
      %s178 = sphi 0, %s180
      %s181 = sphi 0, %s178
      %s182 = sphi 0, %s181
      %s198 = sphi 0, %s182
    $region4: #{tpu_custom_call.1} parent=1 // loop_header_branch
      %19 = sbr.rel (%p17) target = $region8
    $region5: #{tpu_custom_call.1} parent=1 // loop_body
      %s21 = ssub.s32 %s16, 1
      %s22 = ssub.s32 %s16, 2
      %s23 = sadd.s32 %s16, 1
      %s24 = ssub.s32 %s16, %s23
      %p25 = scmp.eq.s32.totalorder %s24, 0
      %s27 = sadd.s32 %s26, 1
      %s28 = scalar_select %p25, %s26, %s27
      %p31 = pneg %p25
      %p32 = scmp.eq.s32.totalorder %s16, 1
      %p33 = por %p31, %p32
      %p34 = scmp.ne.s32.totalorder %s26, %s29
      %p35 = scmp.eq.s32.totalorder %s16, 0
      %p36 = por %p34, %p35
      %p37 = scmp.ne.s32.totalorder %s26, %s29
      %p38 = scmp.eq.s32.totalorder %s21, 1
      %p39 = por %p37, %p38
      %p40 = scmp.ne.s32.totalorder %s29, %s30
      %p41 = scmp.eq.s32.totalorder %s21, 0
      %p42 = por %p40, %p41
      %p43 = scmp.ne.s32.totalorder %s29, %s30
      %p44 = scmp.eq.s32.totalorder %s22, 1
      %p45 = por %p43, %p44
      %p47 = scmp.ne.s32.totalorder %s30, %s46
      %p48 = scmp.eq.s32.totalorder %s22, 0
      %p49 = por %p47, %p48
      %s51 = sadd.s32 %s50, 1
      %p54 = scmp.eq.s32.totalorder %s16, 1
      %p55 = scmp.ne.s32.totalorder %s50, %s52
      %p56 = scmp.eq.s32.totalorder %s16, 0
      %p57 = por %p55, %p56
      %p58 = scmp.ne.s32.totalorder %s50, %s52
      %p59 = scmp.eq.s32.totalorder %s21, 1
      %p60 = por %p58, %p59
      %p61 = scmp.ne.s32.totalorder %s52, %s53
      %p62 = scmp.eq.s32.totalorder %s21, 0
      %p63 = por %p61, %p62
      %p64 = scmp.ne.s32.totalorder %s52, %s53
      %p65 = scmp.eq.s32.totalorder %s22, 1
      %p66 = por %p64, %p65
      %p68 = scmp.ne.s32.totalorder %s53, %s67
      %p69 = scmp.eq.s32.totalorder %s22, 0
      %p70 = por %p68, %p69
      %s72 = sadd.s32 %s71, 1
      %p75 = scmp.eq.s32.totalorder %s16, 1
      %p76 = scmp.ne.s32.totalorder %s71, %s73
      %p77 = scmp.eq.s32.totalorder %s16, 0
      %p78 = por %p76, %p77
      %p79 = scmp.ne.s32.totalorder %s71, %s73
      %p80 = scmp.eq.s32.totalorder %s21, 1
      %p81 = por %p79, %p80
      %p82 = scmp.ne.s32.totalorder %s73, %s74
      %p83 = scmp.eq.s32.totalorder %s21, 0
      %p84 = por %p82, %p83
      %p85 = scmp.ne.s32.totalorder %s73, %s74
      %p86 = scmp.eq.s32.totalorder %s22, 1
      %p87 = por %p85, %p86
      %p89 = scmp.ne.s32.totalorder %s74, %s88
      %p90 = scmp.eq.s32.totalorder %s22, 0
      %p91 = por %p89, %p90
      %s93 = sadd.s32 %s92, 1
      %p96 = scmp.eq.s32.totalorder %s16, 1
      %p97 = scmp.ne.s32.totalorder %s92, %s94
      %p98 = scmp.eq.s32.totalorder %s16, 0
      %p99 = por %p97, %p98
      %p100 = scmp.ne.s32.totalorder %s92, %s94
      %p101 = scmp.eq.s32.totalorder %s21, 1
      %p102 = por %p100, %p101
      %p103 = scmp.ne.s32.totalorder %s94, %s95
      %p104 = scmp.eq.s32.totalorder %s21, 0
      %p105 = por %p103, %p104
      %p106 = scmp.ne.s32.totalorder %s94, %s95
      %p107 = scmp.eq.s32.totalorder %s22, 1
      %p108 = por %p106, %p107
      %p110 = scmp.ne.s32.totalorder %s95, %s109
      %p111 = scmp.eq.s32.totalorder %s22, 0
      %p112 = por %p110, %p111
      %s114 = sadd.s32 %s113, 1
      %p117 = scmp.eq.s32.totalorder %s16, 1
      %p118 = scmp.ne.s32.totalorder %s113, %s115
      %p119 = scmp.eq.s32.totalorder %s16, 0
      %p120 = por %p118, %p119
      %p121 = scmp.ne.s32.totalorder %s113, %s115
      %p122 = scmp.eq.s32.totalorder %s21, 1
      %p123 = por %p121, %p122
      %p124 = scmp.ne.s32.totalorder %s115, %s116
      %p125 = scmp.eq.s32.totalorder %s21, 0
      %p126 = por %p124, %p125
      %p127 = scmp.ne.s32.totalorder %s115, %s116
      %p128 = scmp.eq.s32.totalorder %s22, 1
      %p129 = por %p127, %p128
      %p131 = scmp.ne.s32.totalorder %s116, %s130
      %p132 = scmp.eq.s32.totalorder %s22, 0
      %p133 = por %p131, %p132
      %s135 = sadd.s32 %s134, 1
      %p138 = scmp.eq.s32.totalorder %s16, 1
      %p139 = scmp.ne.s32.totalorder %s134, %s136
      %p140 = scmp.eq.s32.totalorder %s16, 0
      %p141 = por %p139, %p140
      %p142 = scmp.ne.s32.totalorder %s134, %s136
      %p143 = scmp.eq.s32.totalorder %s21, 1
      %p144 = por %p142, %p143
      %p145 = scmp.ne.s32.totalorder %s136, %s137
      %p146 = scmp.eq.s32.totalorder %s21, 0
      %p147 = por %p145, %p146
      %p148 = scmp.ne.s32.totalorder %s136, %s137
      %p149 = scmp.eq.s32.totalorder %s22, 1
      %p150 = por %p148, %p149
      %p152 = scmp.ne.s32.totalorder %s137, %s151
      %p153 = scmp.eq.s32.totalorder %s22, 0
      %p154 = por %p152, %p153
      %s156 = sadd.s32 %s155, 1
      %p159 = scmp.eq.s32.totalorder %s16, 1
      %p160 = scmp.ne.s32.totalorder %s155, %s157
      %p161 = scmp.eq.s32.totalorder %s16, 0
      %p162 = por %p160, %p161
      %p163 = scmp.ne.s32.totalorder %s155, %s157
      %p164 = scmp.eq.s32.totalorder %s21, 1
      %p165 = por %p163, %p164
      %p166 = scmp.ne.s32.totalorder %s157, %s158
      %p167 = scmp.eq.s32.totalorder %s21, 0
      %p168 = por %p166, %p167
      %p169 = scmp.ne.s32.totalorder %s157, %s158
      %p170 = scmp.eq.s32.totalorder %s22, 1
      %p171 = por %p169, %p170
      %p173 = scmp.ne.s32.totalorder %s158, %s172
      %p174 = scmp.eq.s32.totalorder %s22, 0
      %p175 = por %p173, %p174
      %s176 = ssub.s32 %s16, %s23
      %p177 = scmp.eq.s32.totalorder %s176, 0
      %s179 = sadd.s32 %s178, 1
      %s180 = scalar_select %p177, %s178, %s179
      %p183 = pneg %p177
      %p184 = scmp.eq.s32.totalorder %s16, 1
      %p185 = por %p183, %p184
      %p186 = scmp.ne.s32.totalorder %s178, %s181
      %p187 = scmp.eq.s32.totalorder %s16, 0
      %p188 = por %p186, %p187
      %p189 = scmp.ne.s32.totalorder %s178, %s181
      %p190 = scmp.eq.s32.totalorder %s21, 1
      %p191 = por %p189, %p190
      %p192 = scmp.ne.s32.totalorder %s181, %s182
      %p193 = scmp.eq.s32.totalorder %s21, 0
      %p194 = por %p192, %p193
      %p195 = scmp.ne.s32.totalorder %s181, %s182
      %p196 = scmp.eq.s32.totalorder %s22, 1
      %p197 = por %p195, %p196
      %p199 = scmp.ne.s32.totalorder %s182, %s198
      %p200 = scmp.eq.s32.totalorder %s22, 0
      %p201 = por %p199, %p200
      %p202 = scmp.le.s32.totalorder 1, %s16
      %p203 = scmp.lt.s32.totalorder %s16, 3
      %p204 = pnand %p202, %p203
      %p205 = pneg %p204
      // Predicated region
      $region9: #{tpu_custom_call.1} parent=5 // pred_check
        _
      $region10: #{tpu_custom_call.1} parent=5 // pred_check_branch
        %207 = sbr.rel (%p204) target = $region12
      $region11: #{tpu_custom_call.1} parent=5 // pred_region
        %s208 = ssub.s32 %s16, 1
        // Predicated region
        $region13: #{tpu_custom_call.1} parent=11 // pred_check
          %p209 = pneg %p63
        $region14: #{tpu_custom_call.1} parent=11 // pred_check_branch
          %211 = sbr.rel (%p209) target = $region16
        $region15: #{tpu_custom_call.1} parent=11 // pred_region
          _
        $region16: #{tpu_custom_call.1} parent=11 // pred_fallthru
          _
        // Predicated region
        $region17: #{tpu_custom_call.1} parent=11 // pred_check
          %p212 = pneg %p84
        $region18: #{tpu_custom_call.1} parent=11 // pred_check_branch
          %214 = sbr.rel (%p212) target = $region20
        $region19: #{tpu_custom_call.1} parent=11 // pred_region
          _
        $region20: #{tpu_custom_call.1} parent=11 // pred_fallthru
          _
        // Predicated region
        $region21: #{tpu_custom_call.1} parent=11 // pred_check
          %p215 = pneg %p105
        $region22: #{tpu_custom_call.1} parent=11 // pred_check_branch
          %217 = sbr.rel (%p215) target = $region24
        $region23: #{tpu_custom_call.1} parent=11 // pred_region
          _
        $region24: #{tpu_custom_call.1} parent=11 // pred_fallthru
          _
        // Predicated region
        $region25: #{tpu_custom_call.1} parent=11 // pred_check
          %p218 = pneg %p126
        $region26: #{tpu_custom_call.1} parent=11 // pred_check_branch
          %220 = sbr.rel (%p218) target = $region28
        $region27: #{tpu_custom_call.1} parent=11 // pred_region
          _
        $region28: #{tpu_custom_call.1} parent=11 // pred_fallthru
          _
        // Predicated region
        $region29: #{tpu_custom_call.1} parent=11 // pred_check
          %p221 = pneg %p147
        $region30: #{tpu_custom_call.1} parent=11 // pred_check_branch
          %223 = sbr.rel (%p221) target = $region32
        $region31: #{tpu_custom_call.1} parent=11 // pred_region
          _
        $region32: #{tpu_custom_call.1} parent=11 // pred_fallthru
          _
        // Predicated region
        $region33: #{tpu_custom_call.1} parent=11 // pred_check
          %p224 = pneg %p168
        $region34: #{tpu_custom_call.1} parent=11 // pred_check_branch
          %226 = sbr.rel (%p224) target = $region36
        $region35: #{tpu_custom_call.1} parent=11 // pred_region
          _
        $region36: #{tpu_custom_call.1} parent=11 // pred_fallthru
          _
      $region12: #{tpu_custom_call.1} parent=5 // pred_fallthru
        _
      %p227 = scmp.lt.s32.totalorder %s16, 2
      // Predicated region
      $region37: #{tpu_custom_call.1} parent=5 // pred_check
        %p228 = pneg %p227
      $region38: #{tpu_custom_call.1} parent=5 // pred_check_branch
        %230 = sbr.rel (%p228) target = $region40
      $region39: #{tpu_custom_call.1} parent=5 // pred_region
        // Predicated region
        $region41: #{tpu_custom_call.1} parent=39 // pred_check
          %p231 = pneg %p36
        $region42: #{tpu_custom_call.1} parent=39 // pred_check_branch
          %233 = sbr.rel (%p231) target = $region44
        $region43: #{tpu_custom_call.1} parent=39 // pred_region
          %p234 = scmp.lt.s32.totalorder %s16, 1
          %s235 = scalar_select %p234, %s16, 1
          %s236 = smul.addr %s235, 7
          %s237 = smul.addr %s236, 4
          %s238 = scalar_lea.vmem %s0, %s237
        $region44: #{tpu_custom_call.1} parent=39 // pred_fallthru
          _
      $region40: #{tpu_custom_call.1} parent=5 // pred_fallthru
        _
      %p239 = scmp.le.s32.totalorder 1, %s16
      %p240 = scmp.lt.s32.totalorder %s16, 3
      %p241 = pnand %p239, %p240
      %p242 = pneg %p241
      // Predicated region
      $region45: #{tpu_custom_call.1} parent=5 // pred_check
        _
      $region46: #{tpu_custom_call.1} parent=5 // pred_check_branch
        %244 = sbr.rel (%p241) target = $region48
      $region47: #{tpu_custom_call.1} parent=5 // pred_region
        %s245 = ssub.s32 %s16, 1
        %p246 = scmp.lt.s32.totalorder %s21, 1
        %s247 = scalar_select %p246, %s21, 1
        %s248 = smul.addr %s247, 7
        %s249 = smul.addr %s248, 4
        %s250 = scalar_lea.vmem %s0, %s249
        %p251 = pneg %p42
        %p252 = pneg %p39
        %p253 = pneg %p63
        %p254 = pneg %p60
        %p255 = pneg %p84
        %p256 = pneg %p81
        %p257 = pneg %p105
        %p258 = pneg %p102
        %p259 = pneg %p126
        %p260 = pneg %p123
        %p261 = pneg %p147
        %p262 = pneg %p144
        %p263 = pneg %p168
        %p264 = pneg %p165
        %p265 = pneg %p194
        %p266 = pneg %p191
        %s267 = sand.u32 %s181, 1
        %s268 = scalar_lea.sflag [#allocation3], %s267
        %s269 = sand.u32 %s181, 1
        %s270 = smul.addr %s269, 56
        %s271 = scalar_lea.vmem [#allocation2], %s270
        %p272 = scmp.lt.s32.totalorder %s21, 1
        %s273 = scalar_select %p272, %s21, 1
        %s274 = smul.addr %s273, 7
        %s275 = smul.addr %s274, 4
        %s276 = scalar_lea.vmem %s0, %s275
        %v278 = vld [vmem:[%s276] sm:$0xff]
        %v279 = vld [vmem:[%s276 + $0x8] sm:$0xff]
        %v280 = vld [vmem:[%s276 + $0x10] sm:$0xff]
        %v281 = vld [vmem:[%s276 + $0x18] sm:$0xf]
        %v282 = vld [vmem:[%s1] sm:$0xf]
        %v283 = vld [vmem:[%s1 + $0x4] sm:$0xf]
        %v284 = vld [vmem:[%s1 + $0x8] sm:$0xf]
        %v285 = vld [vmem:[%s1 + $0xc] sm:$0xf]
        %v286 = vld [vmem:[%s1 + $0x10] sm:$0xf]
        %v287 = vld [vmem:[%s1 + $0x14] sm:$0xf]
        %v288 = vld [vmem:[%s1 + $0x18] sm:$0xf]
        %v289 = vld [vmem:[%s1 + $0x1c] sm:$0xf]
        %v290 = vld [vmem:[%s1 + $0x20] sm:$0xf]
        %v291 = vld [vmem:[%s1 + $0x24] sm:$0xf]
        %v292 = vld [vmem:[%s1 + $0x28] sm:$0xf]
        %v293 = vld [vmem:[%s1 + $0x2c] sm:$0xf]
        %v294 = vld [vmem:[%s1 + $0x30] sm:$0xf]
        %v295 = vld [vmem:[%s1 + $0x34] sm:$0xf]
        %v296 = vld [vmem:[%s1 + $0x38] sm:$0xf]
        %v297 = vld [vmem:[%s1 + $0x3c] sm:$0xf]
        %v298 = vld [vmem:[%s1 + $0x40] sm:$0xf]
        %v299 = vld [vmem:[%s1 + $0x44] sm:$0xf]
        %v300 = vld [vmem:[%s1 + $0x48] sm:$0xf]
        %v301 = vld [vmem:[%s1 + $0x4c] sm:$0xf]
        %v302 = vld [vmem:[%s1 + $0x50] sm:$0xf]
        %v303 = vld [vmem:[%s1 + $0x54] sm:$0xf]
        %v304 = vld [vmem:[%s1 + $0x58] sm:$0xf]
        %v305 = vld [vmem:[%s1 + $0x5c] sm:$0xf]
        %v306 = vld [vmem:[%s1 + $0x60] sm:$0xf]
        %v307 = vld [vmem:[%s1 + $0x64] sm:$0xf]
        %v308 = vld [vmem:[%s1 + $0x68] sm:$0xf]
        %v309 = vld [vmem:[%s1 + $0x6c] sm:$0xf]
        %v310 = vld [vmem:[%s1 + $0x70] sm:$0xf]
        %v311 = vld [vmem:[%s1 + $0x74] sm:$0xf]
        %v312 = vld [vmem:[%s1 + $0x78] sm:$0xf]
        %v313 = vld [vmem:[%s1 + $0x7c] sm:$0xf]
        %v314 = vld [vmem:[%s1 + $0x80] sm:$0xf]
        %v315 = vld [vmem:[%s1 + $0x84] sm:$0xf]
        %v316 = vld [vmem:[%s1 + $0x88] sm:$0xf]
        %v317 = vld [vmem:[%s1 + $0x8c] sm:$0xf]
        %v318 = vld [vmem:[%s1 + $0x90] sm:$0xf]
        %v319 = vld [vmem:[%s1 + $0x94] sm:$0xf]
        %v320 = vld [vmem:[%s1 + $0x98] sm:$0xf]
        %v321 = vld [vmem:[%s1 + $0x9c] sm:$0xf]
        %v322 = vld [vmem:[%s1 + $0xa0] sm:$0xf]
        %v323 = vld [vmem:[%s1 + $0xa4] sm:$0xf]
        %v324 = vld [vmem:[%s1 + $0xa8] sm:$0xf]
        %v325 = vld [vmem:[%s1 + $0xac] sm:$0xf]
        %v326 = vld [vmem:[%s1 + $0xb0] sm:$0xf]
        %v327 = vld [vmem:[%s1 + $0xb4] sm:$0xf]
        %v328 = vld [vmem:[%s1 + $0xb8] sm:$0xf]
        %v329 = vld [vmem:[%s1 + $0xbc] sm:$0xf]
        %v330 = vld [vmem:[%s1 + $0xc0] sm:$0xf]
        %v331 = vld [vmem:[%s1 + $0xc4] sm:$0xf]
        %v332 = vld [vmem:[%s1 + $0xc8] sm:$0xf]
        %v333 = vld [vmem:[%s1 + $0xcc] sm:$0xf]
        %v334 = vld [vmem:[%s1 + $0xd0] sm:$0xf]
        %v335 = vld [vmem:[%s1 + $0xd4] sm:$0xf]
        %v336 = vld [vmem:[%s1 + $0xd8] sm:$0xf]
        %v337 = vld [vmem:[%s1 + $0xdc] sm:$0xf]
        %v338 = vld [vmem:[%s1 + $0xe0] sm:$0xf]
        %v339 = vld [vmem:[%s1 + $0xe4] sm:$0xf]
        %v340 = vld [vmem:[%s1 + $0xe8] sm:$0xf]
        %v341 = vld [vmem:[%s1 + $0xec] sm:$0xf]
        %v342 = vld [vmem:[%s1 + $0xf0] sm:$0xf]
        %v343 = vld [vmem:[%s1 + $0xf4] sm:$0xf]
        %v344 = vld [vmem:[%s1 + $0xf8] sm:$0xf]
        %v345 = vld [vmem:[%s1 + $0xfc] sm:$0xf]
        %v346 = vld [vmem:[%s1 + $0x100] sm:$0xf]
        %v347 = vld [vmem:[%s1 + $0x104] sm:$0xf]
        %v348 = vld [vmem:[%s1 + $0x108] sm:$0xf]
        %v349 = vld [vmem:[%s1 + $0x10c] sm:$0xf]
        %v350 = vld [vmem:[%s1 + $0x110] sm:$0xf]
        %v351 = vld [vmem:[%s1 + $0x114] sm:$0xf]
        %v352 = vld [vmem:[%s1 + $0x118] sm:$0xf]
        %v353 = vld [vmem:[%s1 + $0x11c] sm:$0xf]
        %v354 = vld [vmem:[%s1 + $0x120] sm:$0xf]
        %v355 = vld [vmem:[%s1 + $0x124] sm:$0xf]
        %v356 = vld [vmem:[%s1 + $0x128] sm:$0xf]
        %v357 = vld [vmem:[%s1 + $0x12c] sm:$0xf]
        %v358 = vld [vmem:[%s1 + $0x130] sm:$0xf]
        %v359 = vld [vmem:[%s1 + $0x134] sm:$0xf]
        %v360 = vld [vmem:[%s1 + $0x138] sm:$0xf]
        %v361 = vld [vmem:[%s1 + $0x13c] sm:$0xf]
        %v362 = vld [vmem:[%s1 + $0x140] sm:$0xf]
        %v363 = vld [vmem:[%s1 + $0x144] sm:$0xf]
        %v364 = vld [vmem:[%s1 + $0x148] sm:$0xf]
        %v365 = vld [vmem:[%s1 + $0x14c] sm:$0xf]
        %v366 = vld [vmem:[%s1 + $0x150] sm:$0xf]
        %v367 = vld [vmem:[%s1 + $0x154] sm:$0xf]
        %v368 = vld [vmem:[%s1 + $0x158] sm:$0xf]
        %v369 = vld [vmem:[%s1 + $0x15c] sm:$0xf]
        %v370 = vld [vmem:[%s1 + $0x160] sm:$0xf]
        %v371 = vld [vmem:[%s1 + $0x164] sm:$0xf]
        %v372 = vld [vmem:[%s1 + $0x168] sm:$0xf]
        %v373 = vld [vmem:[%s1 + $0x16c] sm:$0xf]
        %v374 = vld [vmem:[%s1 + $0x170] sm:$0xf]
        %v375 = vld [vmem:[%s1 + $0x174] sm:$0xf]
        %v376 = vld [vmem:[%s1 + $0x178] sm:$0xf]
        %v377 = vld [vmem:[%s1 + $0x17c] sm:$0xf]
        %v378 = vld [vmem:[%s1 + $0x180] sm:$0xf]
        %v379 = vld [vmem:[%s1 + $0x184] sm:$0xf]
        %v380 = vld [vmem:[%s2] sm:$0x1]
        %v382 = vperm.slane %v380, 0
        %v388 = vunpack.c.l.b16 %v278
        %v389 = vunpack.c.h.b16 %v278
        %v390 = vunpack.c.l.b16 %v279
        %v391 = vunpack.c.h.b16 %v279
        %v392 = vunpack.c.l.b16 %v280
        %v393 = vunpack.c.h.b16 %v280
        %v394 = vunpack.c.l.b16 %v281
        %v395 = vpack.c.b16 %v388, %v388
        %v396 = vpack.c.b16 %v389, %v389
        %v397 = vpack.c.b16 %v390, %v390
        %v398 = vpack.c.b16 %v391, %v391
        %v399 = vpack.c.b16 %v392, %v392
        %v400 = vpack.c.b16 %v393, %v393
        %v401 = vpack.c.b16 %v394, %v394
        %v506 = vunpack.c.l.b16 %v282
        %v507 = vunpack.c.l.b16 %v283
        %v508 = vunpack.c.l.b16 %v284
        %v509 = vunpack.c.l.b16 %v285
        %v510 = vunpack.c.l.b16 %v286
        %v511 = vunpack.c.l.b16 %v287
        %v512 = vunpack.c.l.b16 %v288
        %v513 = vunpack.c.l.b16 %v289
        %v514 = vunpack.c.l.b16 %v290
        %v515 = vunpack.c.l.b16 %v291
        %v516 = vunpack.c.l.b16 %v292
        %v517 = vunpack.c.l.b16 %v293
        %v518 = vunpack.c.l.b16 %v294
        %v519 = vunpack.c.l.b16 %v295
        %v520 = vunpack.c.l.b16 %v296
        %v521 = vunpack.c.l.b16 %v297
        %v522 = vunpack.c.l.b16 %v298
        %v523 = vunpack.c.l.b16 %v299
        %v524 = vunpack.c.l.b16 %v300
        %v525 = vunpack.c.l.b16 %v301
        %v526 = vunpack.c.l.b16 %v302
        %v527 = vunpack.c.l.b16 %v303
        %v528 = vunpack.c.l.b16 %v304
        %v529 = vunpack.c.l.b16 %v305
        %v530 = vunpack.c.l.b16 %v306
        %v531 = vunpack.c.l.b16 %v307
        %v532 = vunpack.c.l.b16 %v308
        %v533 = vunpack.c.l.b16 %v309
        %v534 = vunpack.c.l.b16 %v310
        %v535 = vunpack.c.l.b16 %v311
        %v536 = vunpack.c.l.b16 %v312
        %v537 = vunpack.c.l.b16 %v313
        %v538 = vunpack.c.l.b16 %v314
        %v539 = vunpack.c.l.b16 %v315
        %v540 = vunpack.c.l.b16 %v316
        %v541 = vunpack.c.l.b16 %v317
        %v542 = vunpack.c.l.b16 %v318
        %v543 = vunpack.c.l.b16 %v319
        %v544 = vunpack.c.l.b16 %v320
        %v545 = vunpack.c.l.b16 %v321
        %v546 = vunpack.c.l.b16 %v322
        %v547 = vunpack.c.l.b16 %v323
        %v548 = vunpack.c.l.b16 %v324
        %v549 = vunpack.c.l.b16 %v325
        %v550 = vunpack.c.l.b16 %v326
        %v551 = vunpack.c.l.b16 %v327
        %v552 = vunpack.c.l.b16 %v328
        %v553 = vunpack.c.l.b16 %v329
        %v554 = vunpack.c.l.b16 %v330
        %v555 = vunpack.c.l.b16 %v331
        %v556 = vunpack.c.l.b16 %v332
        %v557 = vunpack.c.l.b16 %v333
        %v558 = vunpack.c.l.b16 %v334
        %v559 = vunpack.c.l.b16 %v335
        %v560 = vunpack.c.l.b16 %v336
        %v561 = vunpack.c.l.b16 %v337
        %v562 = vunpack.c.l.b16 %v338
        %v563 = vunpack.c.l.b16 %v339
        %v564 = vunpack.c.l.b16 %v340
        %v565 = vunpack.c.l.b16 %v341
        %v566 = vunpack.c.l.b16 %v342
        %v567 = vunpack.c.l.b16 %v343
        %v568 = vunpack.c.l.b16 %v344
        %v569 = vunpack.c.l.b16 %v345
        %v570 = vunpack.c.l.b16 %v346
        %v571 = vunpack.c.l.b16 %v347
        %v572 = vunpack.c.l.b16 %v348
        %v573 = vunpack.c.l.b16 %v349
        %v574 = vunpack.c.l.b16 %v350
        %v575 = vunpack.c.l.b16 %v351
        %v576 = vunpack.c.l.b16 %v352
        %v577 = vunpack.c.l.b16 %v353
        %v578 = vunpack.c.l.b16 %v354
        %v579 = vunpack.c.l.b16 %v355
        %v580 = vunpack.c.l.b16 %v356
        %v581 = vunpack.c.l.b16 %v357
        %v582 = vunpack.c.l.b16 %v358
        %v583 = vunpack.c.l.b16 %v359
        %v584 = vunpack.c.l.b16 %v360
        %v585 = vunpack.c.l.b16 %v361
        %v586 = vunpack.c.l.b16 %v362
        %v587 = vunpack.c.l.b16 %v363
        %v588 = vunpack.c.l.b16 %v364
        %v589 = vunpack.c.l.b16 %v365
        %v590 = vunpack.c.l.b16 %v366
        %v591 = vunpack.c.l.b16 %v367
        %v592 = vunpack.c.l.b16 %v368
        %v593 = vunpack.c.l.b16 %v369
        %v594 = vunpack.c.l.b16 %v370
        %v595 = vunpack.c.l.b16 %v371
        %v596 = vunpack.c.l.b16 %v372
        %v597 = vunpack.c.l.b16 %v373
        %v598 = vunpack.c.l.b16 %v374
        %v599 = vunpack.c.l.b16 %v375
        %v600 = vunpack.c.l.b16 %v376
        %v601 = vunpack.c.l.b16 %v377
        %v602 = vunpack.c.l.b16 %v378
        %v603 = vunpack.c.l.b16 %v379
        %v604 = vpack.c.b16 %v507, %v506
        %v605 = vpack.c.b16 %v509, %v508
        %v606 = vpack.c.b16 %v511, %v510
        %v607 = vpack.c.b16 %v513, %v512
        %v608 = vpack.c.b16 %v515, %v514
        %v609 = vpack.c.b16 %v517, %v516
        %v610 = vpack.c.b16 %v519, %v518
        %v611 = vpack.c.b16 %v521, %v520
        %v612 = vpack.c.b16 %v523, %v522
        %v613 = vpack.c.b16 %v525, %v524
        %v614 = vpack.c.b16 %v527, %v526
        %v615 = vpack.c.b16 %v529, %v528
        %v616 = vpack.c.b16 %v531, %v530
        %v617 = vpack.c.b16 %v533, %v532
        %v618 = vpack.c.b16 %v535, %v534
        %v619 = vpack.c.b16 %v537, %v536
        %v620 = vpack.c.b16 %v539, %v538
        %v621 = vpack.c.b16 %v541, %v540
        %v622 = vpack.c.b16 %v543, %v542
        %v623 = vpack.c.b16 %v545, %v544
        %v624 = vpack.c.b16 %v547, %v546
        %v625 = vpack.c.b16 %v549, %v548
        %v626 = vpack.c.b16 %v551, %v550
        %v627 = vpack.c.b16 %v553, %v552
        %v628 = vpack.c.b16 %v555, %v554
        %v629 = vpack.c.b16 %v557, %v556
        %v630 = vpack.c.b16 %v559, %v558
        %v631 = vpack.c.b16 %v561, %v560
        %v632 = vpack.c.b16 %v563, %v562
        %v633 = vpack.c.b16 %v565, %v564
        %v634 = vpack.c.b16 %v567, %v566
        %v635 = vpack.c.b16 %v569, %v568
        %v636 = vpack.c.b16 %v571, %v570
        %v637 = vpack.c.b16 %v573, %v572
        %v638 = vpack.c.b16 %v575, %v574
        %v639 = vpack.c.b16 %v577, %v576
        %v640 = vpack.c.b16 %v579, %v578
        %v641 = vpack.c.b16 %v581, %v580
        %v642 = vpack.c.b16 %v583, %v582
        %v643 = vpack.c.b16 %v585, %v584
        %v644 = vpack.c.b16 %v587, %v586
        %v645 = vpack.c.b16 %v589, %v588
        %v646 = vpack.c.b16 %v591, %v590
        %v647 = vpack.c.b16 %v593, %v592
        %v648 = vpack.c.b16 %v595, %v594
        %v649 = vpack.c.b16 %v597, %v596
        %v650 = vpack.c.b16 %v599, %v598
        %v651 = vpack.c.b16 %v601, %v600
        %v652 = vpack.c.b16 %v603, %v602
        %vm702 = vcmask 130048
        %v704 = vsel %vm702, %v401, 0
        %706 = vmatpush.bf16.msra.mxu0 %v611
        %707 = vmatpush.bf16.msra.mxu0 %v610
        %708 = vmatpush.bf16.msra.mxu0 %v609
        %709 = vmatpush.bf16.msra.mxu0 %v608
        %710 = vmatpush.bf16.msra.mxu0 %v607
        %711 = vmatpush.bf16.msra.mxu0 %v606
        %712 = vmatpush.bf16.msra.mxu0 %v605
        %713 = vmatpush.bf16.msra.mxu0 %v604
        %714 = vmatmul.bf16.gmra.mxu0 %v395
        %v715 = vpop.f32.mrf.mxu0
        %v716 = vadd.f32 %v382, %v715
        %v717 = vpop.f32.mrf.mxu0
        %718 = vdwg.mxu0
        %719 = vmatpush.bf16.msra.mxu0 %v619
        %720 = vmatpush.bf16.msra.mxu0 %v618
        %721 = vmatpush.bf16.msra.mxu0 %v617
        %722 = vmatpush.bf16.msra.mxu0 %v616
        %723 = vmatpush.bf16.msra.mxu0 %v615
        %724 = vmatpush.bf16.msra.mxu0 %v614
        %725 = vmatpush.bf16.msra.mxu0 %v613
        %726 = vmatpush.bf16.msra.mxu0 %v612
        %727 = vmatmul.bf16.gmra.mxu0 %v396
        %v728 = vpop.f32.mrf.mxu0
        %v729 = vadd.f32 %v716, %v728
        %v730 = vpop.f32.mrf.mxu0
        %731 = vdwg.mxu0
        %732 = vmatpush.bf16.msra.mxu0 %v627
        %733 = vmatpush.bf16.msra.mxu0 %v626
        %734 = vmatpush.bf16.msra.mxu0 %v625
        %735 = vmatpush.bf16.msra.mxu0 %v624
        %736 = vmatpush.bf16.msra.mxu0 %v623
        %737 = vmatpush.bf16.msra.mxu0 %v622
        %738 = vmatpush.bf16.msra.mxu0 %v621
        %739 = vmatpush.bf16.msra.mxu0 %v620
        %740 = vmatmul.bf16.gmra.mxu0 %v397
        %v741 = vpop.f32.mrf.mxu0
        %v742 = vadd.f32 %v729, %v741
        %v743 = vpop.f32.mrf.mxu0
        %744 = vdwg.mxu0
        %745 = vmatpush.bf16.msra.mxu0 %v635
        %746 = vmatpush.bf16.msra.mxu0 %v634
        %747 = vmatpush.bf16.msra.mxu0 %v633
        %748 = vmatpush.bf16.msra.mxu0 %v632
        %749 = vmatpush.bf16.msra.mxu0 %v631
        %750 = vmatpush.bf16.msra.mxu0 %v630
        %751 = vmatpush.bf16.msra.mxu0 %v629
        %752 = vmatpush.bf16.msra.mxu0 %v628
        %753 = vmatmul.bf16.gmra.mxu0 %v398
        %v754 = vpop.f32.mrf.mxu0
        %v755 = vadd.f32 %v742, %v754
        %v756 = vpop.f32.mrf.mxu0
        %757 = vdwg.mxu0
        %758 = vmatpush.bf16.msra.mxu0 %v643
        %759 = vmatpush.bf16.msra.mxu0 %v642
        %760 = vmatpush.bf16.msra.mxu0 %v641
        %761 = vmatpush.bf16.msra.mxu0 %v640
        %762 = vmatpush.bf16.msra.mxu0 %v639
        %763 = vmatpush.bf16.msra.mxu0 %v638
        %764 = vmatpush.bf16.msra.mxu0 %v637
        %765 = vmatpush.bf16.msra.mxu0 %v636
        %766 = vmatmul.bf16.gmra.mxu0 %v399
        %v767 = vpop.f32.mrf.mxu0
        %v768 = vadd.f32 %v755, %v767
        %v769 = vpop.f32.mrf.mxu0
        %770 = vdwg.mxu0
        %771 = vmatpush.bf16.msra.mxu0 %v651
        %772 = vmatpush.bf16.msra.mxu0 %v650
        %773 = vmatpush.bf16.msra.mxu0 %v649
        %774 = vmatpush.bf16.msra.mxu0 %v648
        %775 = vmatpush.bf16.msra.mxu0 %v647
        %776 = vmatpush.bf16.msra.mxu0 %v646
        %777 = vmatpush.bf16.msra.mxu0 %v645
        %778 = vmatpush.bf16.msra.mxu0 %v644
        %779 = vmatmul.bf16.gmra.mxu0 %v400
        %v780 = vpop.f32.mrf.mxu0
        %v781 = vadd.f32 %v768, %v780
        %v782 = vpop.f32.mrf.mxu0
        %783 = vdwg.mxu0
        %784 = vmatpush.bf16.msra.mxu0 0
        %785 = vmatpush.bf16.msra.mxu0 0
        %786 = vmatpush.bf16.msra.mxu0 0
        %787 = vmatpush.bf16.msra.mxu0 0
        %788 = vmatpush.bf16.msra.mxu0 0
        %789 = vmatpush.bf16.msra.mxu0 0
        %790 = vmatpush.bf16.msra.mxu0 0
        %791 = vmatpush.bf16.msra.mxu0 %v652
        %792 = vmatmul.bf16.gmra.mxu0 %v704
        %v793 = vpop.f32.mrf.mxu0
        %v794 = vadd.f32 %v781, %v793
        %v795 = vpop.f32.mrf.mxu0
        %796 = vdwg.mxu0
        %v797 = vmax.f32 %v794, 0.0
        %v798 = vpack.c.bf16 %v797, %v797
        %v799 = vld [vmem:[%s3] sm:$0xf]
        %v800 = vld [vmem:[%s3 + $0x4] sm:$0xf]
        %v801 = vld [vmem:[%s3 + $0x8] sm:$0xf]
        %v802 = vld [vmem:[%s3 + $0xc] sm:$0xf]
        %v803 = vld [vmem:[%s3 + $0x10] sm:$0xf]
        %v804 = vld [vmem:[%s3 + $0x14] sm:$0xf]
        %v805 = vld [vmem:[%s3 + $0x18] sm:$0xf]
        %v806 = vld [vmem:[%s3 + $0x1c] sm:$0xf]
        %v807 = vld [vmem:[%s3 + $0x20] sm:$0xf]
        %v808 = vld [vmem:[%s3 + $0x24] sm:$0xf]
        %v809 = vld [vmem:[%s3 + $0x28] sm:$0xf]
        %v810 = vld [vmem:[%s3 + $0x2c] sm:$0xf]
        %v811 = vld [vmem:[%s3 + $0x30] sm:$0xf]
        %v812 = vld [vmem:[%s3 + $0x34] sm:$0xf]
        %v813 = vld [vmem:[%s3 + $0x38] sm:$0xf]
        %v814 = vld [vmem:[%s3 + $0x3c] sm:$0xf]
        %v815 = vld [vmem:[%s4] sm:$0x1]
        %v817 = vperm.slane %v815, 0
        %v835 = vunpack.c.l.b16 %v799
        %v836 = vunpack.c.l.b16 %v800
        %v837 = vunpack.c.l.b16 %v801
        %v838 = vunpack.c.l.b16 %v802
        %v839 = vunpack.c.l.b16 %v803
        %v840 = vunpack.c.l.b16 %v804
        %v841 = vunpack.c.l.b16 %v805
        %v842 = vunpack.c.l.b16 %v806
        %v843 = vunpack.c.l.b16 %v807
        %v844 = vunpack.c.l.b16 %v808
        %v845 = vunpack.c.l.b16 %v809
        %v846 = vunpack.c.l.b16 %v810
        %v847 = vunpack.c.l.b16 %v811
        %v848 = vunpack.c.l.b16 %v812
        %v849 = vunpack.c.l.b16 %v813
        %v850 = vunpack.c.l.b16 %v814
        %v851 = vpack.c.b16 %v836, %v835
        %v852 = vpack.c.b16 %v838, %v837
        %v853 = vpack.c.b16 %v840, %v839
        %v854 = vpack.c.b16 %v842, %v841
        %v855 = vpack.c.b16 %v844, %v843
        %v856 = vpack.c.b16 %v846, %v845
        %v857 = vpack.c.b16 %v848, %v847
        %v858 = vpack.c.b16 %v850, %v849
        %867 = vmatpush.bf16.msra.mxu0 %v858
        %868 = vmatpush.bf16.msra.mxu0 %v857
        %869 = vmatpush.bf16.msra.mxu0 %v856
        %870 = vmatpush.bf16.msra.mxu0 %v855
        %871 = vmatpush.bf16.msra.mxu0 %v854
        %872 = vmatpush.bf16.msra.mxu0 %v853
        %873 = vmatpush.bf16.msra.mxu0 %v852
        %874 = vmatpush.bf16.msra.mxu0 %v851
        %875 = vmatmul.bf16.gmra.mxu0 %v798
        %v876 = vpop.f32.mrf.mxu0
        %v877 = vadd.f32 %v817, %v876
        %v878 = vpop.f32.mrf.mxu0
        %879 = vdwg.mxu0
        %v880 = vmax.f32 %v877, 0.0
        %v881 = vpack.c.bf16 %v880, %v880
        %v882 = vld [vmem:[%s5] sm:$0xff]
        %v883 = vld [vmem:[%s5 + $0x8] sm:$0xff]
        %v884 = vld [vmem:[%s5 + $0x10] sm:$0xff]
        %v885 = vld [vmem:[%s5 + $0x18] sm:$0xf]
        %v886 = vld [vmem:[%s5 + $0x1c] sm:$0xff]
        %v887 = vld [vmem:[%s5 + $0x24] sm:$0xff]
        %v888 = vld [vmem:[%s5 + $0x2c] sm:$0xff]
        %v889 = vld [vmem:[%s5 + $0x34] sm:$0xf]
        %v890 = vld [vmem:[%s5 + $0x38] sm:$0xff]
        %v891 = vld [vmem:[%s5 + $0x40] sm:$0xff]
        %v892 = vld [vmem:[%s5 + $0x48] sm:$0xff]
        %v893 = vld [vmem:[%s5 + $0x50] sm:$0xf]
        %v894 = vld [vmem:[%s5 + $0x54] sm:$0xff]
        %v895 = vld [vmem:[%s5 + $0x5c] sm:$0xff]
        %v896 = vld [vmem:[%s5 + $0x64] sm:$0xff]
        %v897 = vld [vmem:[%s5 + $0x6c] sm:$0xf]
        %v898 = vld [vmem:[%s5 + $0x70] sm:$0xff]
        %v899 = vld [vmem:[%s5 + $0x78] sm:$0xff]
        %v900 = vld [vmem:[%s5 + $0x80] sm:$0xff]
        %v901 = vld [vmem:[%s5 + $0x88] sm:$0xf]
        %v902 = vld [vmem:[%s5 + $0x8c] sm:$0xff]
        %v903 = vld [vmem:[%s5 + $0x94] sm:$0xff]
        %v904 = vld [vmem:[%s5 + $0x9c] sm:$0xff]
        %v905 = vld [vmem:[%s5 + $0xa4] sm:$0xf]
        %v906 = vld [vmem:[%s5 + $0xa8] sm:$0xff]
        %v907 = vld [vmem:[%s5 + $0xb0] sm:$0xff]
        %v908 = vld [vmem:[%s5 + $0xb8] sm:$0xff]
        %v909 = vld [vmem:[%s5 + $0xc0] sm:$0xf]
        %v910 = vld [vmem:[%s5 + $0xc4] sm:$0xff]
        %v911 = vld [vmem:[%s5 + $0xcc] sm:$0xff]
        %v912 = vld [vmem:[%s5 + $0xd4] sm:$0xff]
        %v913 = vld [vmem:[%s5 + $0xdc] sm:$0xf]
        %v914 = vld [vmem:[%s5 + $0xe0] sm:$0xff]
        %v915 = vld [vmem:[%s5 + $0xe8] sm:$0xff]
        %v916 = vld [vmem:[%s5 + $0xf0] sm:$0xff]
        %v917 = vld [vmem:[%s5 + $0xf8] sm:$0xf]
        %v918 = vld [vmem:[%s5 + $0xfc] sm:$0xff]
        %v919 = vld [vmem:[%s5 + $0x104] sm:$0xff]
        %v920 = vld [vmem:[%s5 + $0x10c] sm:$0xff]
        %v921 = vld [vmem:[%s5 + $0x114] sm:$0xf]
        %v922 = vld [vmem:[%s5 + $0x118] sm:$0xff]
        %v923 = vld [vmem:[%s5 + $0x120] sm:$0xff]
        %v924 = vld [vmem:[%s5 + $0x128] sm:$0xff]
        %v925 = vld [vmem:[%s5 + $0x130] sm:$0xf]
        %v926 = vld [vmem:[%s5 + $0x134] sm:$0xff]
        %v927 = vld [vmem:[%s5 + $0x13c] sm:$0xff]
        %v928 = vld [vmem:[%s5 + $0x144] sm:$0xff]
        %v929 = vld [vmem:[%s5 + $0x14c] sm:$0xf]
        %v930 = vld [vmem:[%s5 + $0x150] sm:$0xff]
        %v931 = vld [vmem:[%s5 + $0x158] sm:$0xff]
        %v932 = vld [vmem:[%s5 + $0x160] sm:$0xff]
        %v933 = vld [vmem:[%s5 + $0x168] sm:$0xf]
        %v934 = vld [vmem:[%s5 + $0x16c] sm:$0xff]
        %v935 = vld [vmem:[%s5 + $0x174] sm:$0xff]
        %v936 = vld [vmem:[%s5 + $0x17c] sm:$0xff]
        %v937 = vld [vmem:[%s5 + $0x184] sm:$0xf]
        %v938 = vld [vmem:[%s5 + $0x188] sm:$0xff]
        %v939 = vld [vmem:[%s5 + $0x190] sm:$0xff]
        %v940 = vld [vmem:[%s5 + $0x198] sm:$0xff]
        %v941 = vld [vmem:[%s5 + $0x1a0] sm:$0xf]
        %v942 = vld [vmem:[%s5 + $0x1a4] sm:$0xff]
        %v943 = vld [vmem:[%s5 + $0x1ac] sm:$0xff]
        %v944 = vld [vmem:[%s5 + $0x1b4] sm:$0xff]
        %v945 = vld [vmem:[%s5 + $0x1bc] sm:$0xf]
        %v946 = vld [vmem:[%s6] sm:$0x7f]
        %v948 = vperm.slane %v946, 0
        %v949 = vperm.slane %v946, 1
        %v950 = vperm.slane %v946, 2
        %v951 = vperm.slane %v946, 3
        %v952 = vperm.slane %v946, 4
        %v953 = vperm.slane %v946, 5
        %v954 = vperm.slane %v946, 6
        %v1026 = vunpack.c.l.b16 %v882
        %v1027 = vunpack.c.h.b16 %v882
        %v1028 = vunpack.c.l.b16 %v883
        %v1029 = vunpack.c.h.b16 %v883
        %v1030 = vunpack.c.l.b16 %v884
        %v1031 = vunpack.c.h.b16 %v884
        %v1032 = vunpack.c.l.b16 %v885
        %v1033 = vunpack.c.l.b16 %v886
        %v1034 = vunpack.c.h.b16 %v886
        %v1035 = vunpack.c.l.b16 %v887
        %v1036 = vunpack.c.h.b16 %v887
        %v1037 = vunpack.c.l.b16 %v888
        %v1038 = vunpack.c.h.b16 %v888
        %v1039 = vunpack.c.l.b16 %v889
        %v1040 = vunpack.c.l.b16 %v890
        %v1041 = vunpack.c.h.b16 %v890
        %v1042 = vunpack.c.l.b16 %v891
        %v1043 = vunpack.c.h.b16 %v891
        %v1044 = vunpack.c.l.b16 %v892
        %v1045 = vunpack.c.h.b16 %v892
        %v1046 = vunpack.c.l.b16 %v893
        %v1047 = vunpack.c.l.b16 %v894
        %v1048 = vunpack.c.h.b16 %v894
        %v1049 = vunpack.c.l.b16 %v895
        %v1050 = vunpack.c.h.b16 %v895
        %v1051 = vunpack.c.l.b16 %v896
        %v1052 = vunpack.c.h.b16 %v896
        %v1053 = vunpack.c.l.b16 %v897
        %v1054 = vunpack.c.l.b16 %v898
        %v1055 = vunpack.c.h.b16 %v898
        %v1056 = vunpack.c.l.b16 %v899
        %v1057 = vunpack.c.h.b16 %v899
        %v1058 = vunpack.c.l.b16 %v900
        %v1059 = vunpack.c.h.b16 %v900
        %v1060 = vunpack.c.l.b16 %v901
        %v1061 = vunpack.c.l.b16 %v902
        %v1062 = vunpack.c.h.b16 %v902
        %v1063 = vunpack.c.l.b16 %v903
        %v1064 = vunpack.c.h.b16 %v903
        %v1065 = vunpack.c.l.b16 %v904
        %v1066 = vunpack.c.h.b16 %v904
        %v1067 = vunpack.c.l.b16 %v905
        %v1068 = vunpack.c.l.b16 %v906
        %v1069 = vunpack.c.h.b16 %v906
        %v1070 = vunpack.c.l.b16 %v907
        %v1071 = vunpack.c.h.b16 %v907
        %v1072 = vunpack.c.l.b16 %v908
        %v1073 = vunpack.c.h.b16 %v908
        %v1074 = vunpack.c.l.b16 %v909
        %v1075 = vunpack.c.l.b16 %v910
        %v1076 = vunpack.c.h.b16 %v910
        %v1077 = vunpack.c.l.b16 %v911
        %v1078 = vunpack.c.h.b16 %v911
        %v1079 = vunpack.c.l.b16 %v912
        %v1080 = vunpack.c.h.b16 %v912
        %v1081 = vunpack.c.l.b16 %v913
        %v1082 = vunpack.c.l.b16 %v914
        %v1083 = vunpack.c.h.b16 %v914
        %v1084 = vunpack.c.l.b16 %v915
        %v1085 = vunpack.c.h.b16 %v915
        %v1086 = vunpack.c.l.b16 %v916
        %v1087 = vunpack.c.h.b16 %v916
        %v1088 = vunpack.c.l.b16 %v917
        %v1089 = vunpack.c.l.b16 %v918
        %v1090 = vunpack.c.h.b16 %v918
        %v1091 = vunpack.c.l.b16 %v919
        %v1092 = vunpack.c.h.b16 %v919
        %v1093 = vunpack.c.l.b16 %v920
        %v1094 = vunpack.c.h.b16 %v920
        %v1095 = vunpack.c.l.b16 %v921
        %v1096 = vunpack.c.l.b16 %v922
        %v1097 = vunpack.c.h.b16 %v922
        %v1098 = vunpack.c.l.b16 %v923
        %v1099 = vunpack.c.h.b16 %v923
        %v1100 = vunpack.c.l.b16 %v924
        %v1101 = vunpack.c.h.b16 %v924
        %v1102 = vunpack.c.l.b16 %v925
        %v1103 = vunpack.c.l.b16 %v926
        %v1104 = vunpack.c.h.b16 %v926
        %v1105 = vunpack.c.l.b16 %v927
        %v1106 = vunpack.c.h.b16 %v927
        %v1107 = vunpack.c.l.b16 %v928
        %v1108 = vunpack.c.h.b16 %v928
        %v1109 = vunpack.c.l.b16 %v929
        %v1110 = vunpack.c.l.b16 %v930
        %v1111 = vunpack.c.h.b16 %v930
        %v1112 = vunpack.c.l.b16 %v931
        %v1113 = vunpack.c.h.b16 %v931
        %v1114 = vunpack.c.l.b16 %v932
        %v1115 = vunpack.c.h.b16 %v932
        %v1116 = vunpack.c.l.b16 %v933
        %v1117 = vunpack.c.l.b16 %v934
        %v1118 = vunpack.c.h.b16 %v934
        %v1119 = vunpack.c.l.b16 %v935
        %v1120 = vunpack.c.h.b16 %v935
        %v1121 = vunpack.c.l.b16 %v936
        %v1122 = vunpack.c.h.b16 %v936
        %v1123 = vunpack.c.l.b16 %v937
        %v1124 = vunpack.c.l.b16 %v938
        %v1125 = vunpack.c.h.b16 %v938
        %v1126 = vunpack.c.l.b16 %v939
        %v1127 = vunpack.c.h.b16 %v939
        %v1128 = vunpack.c.l.b16 %v940
        %v1129 = vunpack.c.h.b16 %v940
        %v1130 = vunpack.c.l.b16 %v941
        %v1131 = vunpack.c.l.b16 %v942
        %v1132 = vunpack.c.h.b16 %v942
        %v1133 = vunpack.c.l.b16 %v943
        %v1134 = vunpack.c.h.b16 %v943
        %v1135 = vunpack.c.l.b16 %v944
        %v1136 = vunpack.c.h.b16 %v944
        %v1137 = vunpack.c.l.b16 %v945
        %v1138 = vpack.c.b16 %v1033, %v1026
        %v1139 = vpack.c.b16 %v1034, %v1027
        %v1140 = vpack.c.b16 %v1035, %v1028
        %v1141 = vpack.c.b16 %v1036, %v1029
        %v1142 = vpack.c.b16 %v1037, %v1030
        %v1143 = vpack.c.b16 %v1038, %v1031
        %v1144 = vpack.c.b16 %v1039, %v1032
        %v1145 = vpack.c.b16 %v1047, %v1040
        %v1146 = vpack.c.b16 %v1048, %v1041
        %v1147 = vpack.c.b16 %v1049, %v1042
        %v1148 = vpack.c.b16 %v1050, %v1043
        %v1149 = vpack.c.b16 %v1051, %v1044
        %v1150 = vpack.c.b16 %v1052, %v1045
        %v1151 = vpack.c.b16 %v1053, %v1046
        %v1152 = vpack.c.b16 %v1061, %v1054
        %v1153 = vpack.c.b16 %v1062, %v1055
        %v1154 = vpack.c.b16 %v1063, %v1056
        %v1155 = vpack.c.b16 %v1064, %v1057
        %v1156 = vpack.c.b16 %v1065, %v1058
        %v1157 = vpack.c.b16 %v1066, %v1059
        %v1158 = vpack.c.b16 %v1067, %v1060
        %v1159 = vpack.c.b16 %v1075, %v1068
        %v1160 = vpack.c.b16 %v1076, %v1069
        %v1161 = vpack.c.b16 %v1077, %v1070
        %v1162 = vpack.c.b16 %v1078, %v1071
        %v1163 = vpack.c.b16 %v1079, %v1072
        %v1164 = vpack.c.b16 %v1080, %v1073
        %v1165 = vpack.c.b16 %v1081, %v1074
        %v1166 = vpack.c.b16 %v1089, %v1082
        %v1167 = vpack.c.b16 %v1090, %v1083
        %v1168 = vpack.c.b16 %v1091, %v1084
        %v1169 = vpack.c.b16 %v1092, %v1085
        %v1170 = vpack.c.b16 %v1093, %v1086
        %v1171 = vpack.c.b16 %v1094, %v1087
        %v1172 = vpack.c.b16 %v1095, %v1088
        %v1173 = vpack.c.b16 %v1103, %v1096
        %v1174 = vpack.c.b16 %v1104, %v1097
        %v1175 = vpack.c.b16 %v1105, %v1098
        %v1176 = vpack.c.b16 %v1106, %v1099
        %v1177 = vpack.c.b16 %v1107, %v1100
        %v1178 = vpack.c.b16 %v1108, %v1101
        %v1179 = vpack.c.b16 %v1109, %v1102
        %v1180 = vpack.c.b16 %v1117, %v1110
        %v1181 = vpack.c.b16 %v1118, %v1111
        %v1182 = vpack.c.b16 %v1119, %v1112
        %v1183 = vpack.c.b16 %v1120, %v1113
        %v1184 = vpack.c.b16 %v1121, %v1114
        %v1185 = vpack.c.b16 %v1122, %v1115
        %v1186 = vpack.c.b16 %v1123, %v1116
        %v1187 = vpack.c.b16 %v1131, %v1124
        %v1188 = vpack.c.b16 %v1132, %v1125
        %v1189 = vpack.c.b16 %v1133, %v1126
        %v1190 = vpack.c.b16 %v1134, %v1127
        %v1191 = vpack.c.b16 %v1135, %v1128
        %v1192 = vpack.c.b16 %v1136, %v1129
        %v1193 = vpack.c.b16 %v1137, %v1130
        %1250 = vmatpush.bf16.msra.mxu0 %v1187
        %1251 = vmatpush.bf16.msra.mxu0 %v1180
        %1252 = vmatpush.bf16.msra.mxu0 %v1173
        %1253 = vmatpush.bf16.msra.mxu0 %v1166
        %1254 = vmatpush.bf16.msra.mxu0 %v1159
        %1255 = vmatpush.bf16.msra.mxu0 %v1152
        %1256 = vmatpush.bf16.msra.mxu0 %v1145
        %1257 = vmatpush.bf16.msra.mxu0 %v1138
        %1258 = vmatmul.bf16.gmra.mxu0 %v881
        %v1259 = vpop.f32.mrf.mxu0
        %v1260 = vadd.f32 %v948, %v1259
        %v1261 = vpop.f32.mrf.mxu0
        %1262 = vdwg.mxu0
        %1263 = vmatpush.bf16.msra.mxu0 %v1188
        %1264 = vmatpush.bf16.msra.mxu0 %v1181
        %1265 = vmatpush.bf16.msra.mxu0 %v1174
        %1266 = vmatpush.bf16.msra.mxu0 %v1167
        %1267 = vmatpush.bf16.msra.mxu0 %v1160
        %1268 = vmatpush.bf16.msra.mxu0 %v1153
        %1269 = vmatpush.bf16.msra.mxu0 %v1146
        %1270 = vmatpush.bf16.msra.mxu0 %v1139
        %1271 = vmatmul.bf16.gmra.mxu0 %v881
        %v1272 = vpop.f32.mrf.mxu0
        %v1273 = vadd.f32 %v949, %v1272
        %v1274 = vpop.f32.mrf.mxu0
        %1275 = vdwg.mxu0
        %1276 = vmatpush.bf16.msra.mxu0 %v1189
        %1277 = vmatpush.bf16.msra.mxu0 %v1182
        %1278 = vmatpush.bf16.msra.mxu0 %v1175
        %1279 = vmatpush.bf16.msra.mxu0 %v1168
        %1280 = vmatpush.bf16.msra.mxu0 %v1161
        %1281 = vmatpush.bf16.msra.mxu0 %v1154
        %1282 = vmatpush.bf16.msra.mxu0 %v1147
        %1283 = vmatpush.bf16.msra.mxu0 %v1140
        %1284 = vmatmul.bf16.gmra.mxu0 %v881
        %v1285 = vpop.f32.mrf.mxu0
        %v1286 = vadd.f32 %v950, %v1285
        %v1287 = vpop.f32.mrf.mxu0
        %1288 = vdwg.mxu0
        %1289 = vmatpush.bf16.msra.mxu0 %v1190
        %1290 = vmatpush.bf16.msra.mxu0 %v1183
        %1291 = vmatpush.bf16.msra.mxu0 %v1176
        %1292 = vmatpush.bf16.msra.mxu0 %v1169
        %1293 = vmatpush.bf16.msra.mxu0 %v1162
        %1294 = vmatpush.bf16.msra.mxu0 %v1155
        %1295 = vmatpush.bf16.msra.mxu0 %v1148
        %1296 = vmatpush.bf16.msra.mxu0 %v1141
        %1297 = vmatmul.bf16.gmra.mxu0 %v881
        %v1298 = vpop.f32.mrf.mxu0
        %v1299 = vadd.f32 %v951, %v1298
        %v1300 = vpop.f32.mrf.mxu0
        %1301 = vdwg.mxu0
        %1302 = vmatpush.bf16.msra.mxu0 %v1191
        %1303 = vmatpush.bf16.msra.mxu0 %v1184
        %1304 = vmatpush.bf16.msra.mxu0 %v1177
        %1305 = vmatpush.bf16.msra.mxu0 %v1170
        %1306 = vmatpush.bf16.msra.mxu0 %v1163
        %1307 = vmatpush.bf16.msra.mxu0 %v1156
        %1308 = vmatpush.bf16.msra.mxu0 %v1149
        %1309 = vmatpush.bf16.msra.mxu0 %v1142
        %1310 = vmatmul.bf16.gmra.mxu0 %v881
        %v1311 = vpop.f32.mrf.mxu0
        %v1312 = vadd.f32 %v952, %v1311
        %v1313 = vpop.f32.mrf.mxu0
        %1314 = vdwg.mxu0
        %1315 = vmatpush.bf16.msra.mxu0 %v1192
        %1316 = vmatpush.bf16.msra.mxu0 %v1185
        %1317 = vmatpush.bf16.msra.mxu0 %v1178
        %1318 = vmatpush.bf16.msra.mxu0 %v1171
        %1319 = vmatpush.bf16.msra.mxu0 %v1164
        %1320 = vmatpush.bf16.msra.mxu0 %v1157
        %1321 = vmatpush.bf16.msra.mxu0 %v1150
        %1322 = vmatpush.bf16.msra.mxu0 %v1143
        %1323 = vmatmul.bf16.gmra.mxu0 %v881
        %v1324 = vpop.f32.mrf.mxu0
        %v1325 = vadd.f32 %v953, %v1324
        %v1326 = vpop.f32.mrf.mxu0
        %1327 = vdwg.mxu0
        %1328 = vmatpush.bf16.msra.mxu0 %v1193
        %1329 = vmatpush.bf16.msra.mxu0 %v1186
        %1330 = vmatpush.bf16.msra.mxu0 %v1179
        %1331 = vmatpush.bf16.msra.mxu0 %v1172
        %1332 = vmatpush.bf16.msra.mxu0 %v1165
        %1333 = vmatpush.bf16.msra.mxu0 %v1158
        %1334 = vmatpush.bf16.msra.mxu0 %v1151
        %1335 = vmatpush.bf16.msra.mxu0 %v1144
        %1336 = vmatmul.bf16.gmra.mxu0 %v881
        %v1337 = vpop.f32.mrf.mxu0
        %v1338 = vadd.f32 %v954, %v1337
        %v1339 = vpop.f32.mrf.mxu0
        %1340 = vdwg.mxu0
        %1341 = vst [vmem:[%s271] sm:$0xff] %v1260
        %1342 = vst [vmem:[%s271 + $0x8] sm:$0xff] %v1273
        %1343 = vst [vmem:[%s271 + $0x10] sm:$0xff] %v1286
        %1344 = vst [vmem:[%s271 + $0x18] sm:$0xff] %v1299
        %1345 = vst [vmem:[%s271 + $0x20] sm:$0xff] %v1312
        %1346 = vst [vmem:[%s271 + $0x28] sm:$0xff] %v1325
        %1347 = vst.msk [vmem:[%s271 + $0x30] sm:$0xff] %vm702, %v1338
        %s1348 = sand.u32 %s181, 1
        %s1349 = scalar_lea.sflag [#allocation3], %s1348
        %s1350 = sand.u32 %s181, 1
        %s1351 = smul.addr %s1350, 56
        %s1352 = scalar_lea.vmem [#allocation2], %s1351
        // Predicated region
        $region49: #{tpu_custom_call.1} parent=47 // pred_check
          %p1353 = pneg %p191
        $region50: #{tpu_custom_call.1} parent=47 // pred_check_branch
          %1355 = sbr.rel (%p1353) target = $region52
        $region51: #{tpu_custom_call.1} parent=47 // pred_region
          %1357 = vsyncadd %s1349, 0
          %s1358 = smul.addr %s21, 7
          %s1359 = smul.addr %s1358, 8
          %s1360 = scalar_lea.hbm %s7, %s1359
          %s1362 = sshll.u32 %s1352, 4
          %s1363 = int_to_ptr.vmem [resolvable:$true] %s1362
          %s1364 = sshll.u32 %s1360, 4
          %s1365 = int_to_ptr.hbm [resolvable:$true] %s1364
          %1367 = dma.vmem_to_hbm [thread:$0]  %s1363, 896, %s1365, %s1349
        $region52: #{tpu_custom_call.1} parent=47 // pred_fallthru
          _
      $region48: #{tpu_custom_call.1} parent=5 // pred_fallthru
        _
      %p1368 = scmp.le.s32.totalorder 2, %s16
      // Predicated region
      $region53: #{tpu_custom_call.1} parent=5 // pred_check
        %p1369 = pneg %p1368
      $region54: #{tpu_custom_call.1} parent=5 // pred_check_branch
        %1371 = sbr.rel (%p1369) target = $region56
      $region55: #{tpu_custom_call.1} parent=5 // pred_region
        %s1372 = ssub.s32 %s16, 2
        // Predicated region
        $region57: #{tpu_custom_call.1} parent=55 // pred_check
          %p1373 = pneg %p197
        $region58: #{tpu_custom_call.1} parent=55 // pred_check_branch
          %1375 = sbr.rel (%p1373) target = $region60
        $region59: #{tpu_custom_call.1} parent=55 // pred_region
          %s1376 = sand.u32 %s182, 1
          %s1377 = scalar_lea.sflag [#allocation3], %s1376
          %s1378 = sand.u32 %s182, 1
          %s1379 = smul.addr %s1378, 56
          %s1380 = scalar_lea.vmem [#allocation2], %s1379
          %1382 = dma.done %s1377, 896
        $region60: #{tpu_custom_call.1} parent=55 // pred_fallthru
          _
      $region56: #{tpu_custom_call.1} parent=5 // pred_fallthru
        _
    $region6: #{tpu_custom_call.1} parent=1 // loop_footer
      %s20 = sadd.s32 1, %s16
    $region7: #{tpu_custom_call.1} parent=1 // loop_footer_branch
      %15 = sbr.rel target = $region3
    $region8: #{tpu_custom_call.1} parent=1 // loop_exit
      _
    %1383 = vsyncpa [#allocation3], 1
    %s1384 = scalar_lea.sflag [#allocation3], 1
    %1385 = vsyncpa %s1384, 1

</llo_original>
